<compile_context>
chip_gen: v7x
topology: tpu7x:2x2x1
jax: 0.10.0
libtpu: 0.0.40
codegen_flags: <defaults>
</compile_context>

<pallas_src>
import math
import jax
import jax.numpy as jnp
from jax.experimental import pallas as pl
from jax.experimental.pallas import tpu as pltpu

_NEG_BIG = -1000000000.0  # Python float -> jaxpr literal (NOT a captured device constant)


def _attn_body(x, w_row, mask, out_dtype):
    # x: (Bt, T, E) caller dtype; w_row: (1, E) f32; mask: (Bt, T) i32 or None.
    xf = x.astype(jnp.float32)
    # scores = tanh(x . w): VPU multiply + lane reduce over E; stays (Bt, T).
    # The skinny (E,1) matvec is deliberately kept off the MXU.
    scores = jnp.tanh(jnp.sum(xf * w_row[None, :, :], axis=-1))        # (Bt, T)
    if mask is not None:
        # masked_fill semantics (not an additive bias) so fully-masked rows
        # still produce a uniform softmax, exactly like the PyTorch module.
        scores = jnp.where(mask == 0, _NEG_BIG, scores)
    # Softmax over the sequence axis (lane reductions, no transposes).
    s_max = jnp.max(scores, axis=-1, keepdims=True)                    # (Bt, 1)
    e = jnp.exp(scores - s_max)                                        # (Bt, T)
    denom = jnp.sum(e, axis=-1, keepdims=True)                         # (Bt, 1)
    a = e / denom          # exact divide: DMA-bound kernel, exactness is free
    # Weighted sum over T (sublane reduce): (Bt, T, E) -> (Bt, E).
    out = jnp.sum(xf * a[:, :, None], axis=1)
    # Pack (output | a_) into one lane-contiguous slab -> single dense-ish store.
    return jnp.concatenate([out.astype(out_dtype), a.astype(out_dtype)], axis=-1)


def _attn_kernel_masked(x_ref, w_ref, m_ref, out_ref):
    out_ref[...] = _attn_body(x_ref[...], w_ref[...], m_ref[...], out_ref.dtype)


def _attn_kernel_nomask(x_ref, w_ref, out_ref):
    out_ref[...] = _attn_body(x_ref[...], w_ref[...], None, out_ref.dtype)


def _round_up(n, m):
    return ((n + m - 1) // m) * m


def _generation_params():
    """Return (x-tile byte target, vmem_limit_bytes) sized per TPU generation."""
    try:
        vmem_phys = int(pltpu.get_tpu_info().vmem_capacity_bytes)
    except Exception:
        vmem_phys = 128 << 20  # assume v5e/v6e-class if the query is unavailable
    if vmem_phys <= (64 << 20):
        # v7x-class: ~3.2 TB/s HBM needs 4-8 MiB tiles, but only 64 MiB VMEM/TC.
        return 6 << 20, 48 << 20
    # v5e / v6e: 128 MiB VMEM; 2-4 MiB tiles already reach ~85-90% of HBM roofline.
    return 4 << 20, 64 << 20


def _pick_b_tile(B, T, E, x_itemsize, tile_target, vmem_limit):
    """Batch-tile rows per grid step: big enough to amortize per-step overhead,
    small enough that the whole in-kernel footprint fits the VMEM budget, and
    never so big that the grid collapses to a single block (megacore)."""
    gran = max(8, 32 // max(1, x_itemsize))       # sublane granularity (8 f32, 16 bf16)
    row_x = T * E * x_itemsize                    # one batch row of the x stream
    # Per-row footprint: double-buffered x input + ~3 x-sized f32 temporaries
    # (f32 upcast + two elementwise products) + the packed output row.
    row_total = 2 * row_x + 3 * T * E * 4 + (E + T) * 4
    rows_by_target = tile_target // max(1, row_x)
    rows_by_vmem = (3 * vmem_limit // 4) // max(1, row_total)
    rows = int(max(1, min(rows_by_target, rows_by_vmem)))
    # TODO(synk): for very long sequences (gran * row_total > VMEM budget) add a
    # second grid axis over T with an online-softmax accumulator instead of
    # relying on the minimum batch tile.
    if rows >= B:
        if B <= gran:
            return B                                           # single full block
        # Cap at ceil(B/2) so n_blocks >= 2 and both v7x TensorCores run.
        return min(_round_up(B, gran), _round_up(-(-B // 2), gran))
    return max(gran, (rows // gran) * gran)


def attention_forward(x, weight, mask=None, *, b_tile=None):
    """x: (B, T, E) float (f32 or bf16); weight: (E, 1) f32; mask: (B, T) or None.
    Returns (output (B, E), a_ (B, T)), both in x.dtype (math done in f32)."""
    x = jnp.asarray(x)                      # keep caller dtype: bf16 halves HBM read
    B, T, E = x.shape
    w_row = jnp.asarray(weight, jnp.float32).reshape(1, E)

    tile_target, vmem_limit = _generation_params()
    if b_tile is None:
        b_tile = _pick_b_tile(B, T, E, x.dtype.itemsize, tile_target, vmem_limit)
    b_tile = int(b_tile)

    n_blocks = -(-B // b_tile)              # ceil div
    Bp = n_blocks * b_tile

    if mask is not None:
        # TODO(synk): an int8 mask stream would quarter the (already tiny) mask DMA bytes.
        mask = jnp.asarray(mask).astype(jnp.int32)
    if Bp != B:
        pad = Bp - B
        x = jnp.pad(x, ((0, pad), (0, 0), (0, 0)))
        if mask is not None:
            mask = jnp.pad(mask, ((0, pad), (0, 0)))   # padded rows sliced off below

    P = E + T                               # packed (output | a_) slab width
    out_shape = jax.ShapeDtypeStruct((Bp, P), x.dtype)

    x_spec = pl.BlockSpec((b_tile, T, E), lambda b: (b, 0, 0))
    w_spec = pl.BlockSpec((1, E), lambda b: (0, 0))
    out_spec = pl.BlockSpec((b_tile, P), lambda b: (b, 0))

    if mask is None:
        kernel = _attn_kernel_nomask
        in_specs = [x_spec, w_spec]
        args = (x, w_row)
    else:
        kernel = _attn_kernel_masked
        in_specs = [x_spec, w_spec, pl.BlockSpec((b_tile, T), lambda b: (b, 0))]
        args = (x, w_row, mask)

    packed = pl.pallas_call(
        kernel,
        out_shape=out_shape,
        grid_spec=pltpu.PrefetchScalarGridSpec(
            num_scalar_prefetch=0,
            grid=(n_blocks,),
            in_specs=in_specs,
            out_specs=out_spec,
        ),
        compiler_params=pltpu.CompilerParams(
            dimension_semantics=("parallel",),
            vmem_limit_bytes=int(vmem_limit),
        ),
    )(*args)

    out = packed[:B, :E]
    a_ = packed[:B, E:]
    return out, a_


def _reference(x, weight, mask=None):
    xf = jnp.asarray(x).astype(jnp.float32)
    w = jnp.asarray(weight, jnp.float32)
    scores = jnp.tanh(jnp.einsum("bte,eo->bto", xf, w))       # (B, T, 1)
    if mask is not None:
        scores = jnp.where(mask[..., None] == 0, -1000000000.0, scores)
    a_ = jax.nn.softmax(scores[..., 0], axis=-1)              # (B, T)
    output = jnp.sum(xf * a_[..., None], axis=1)              # (B, E)
    return output, a_


if __name__ == "__main__":
    B, T, E = 20, 8, 32
    key = jax.random.PRNGKey(0)
    kx, kw, km = jax.random.split(key, 3)

    x = jax.random.normal(kx, (B, T, E), dtype=jnp.float32)

    # Deterministic kaiming_uniform_(a=sqrt(5)) init for weight (E, 1):
    # fan_in = 1, gain = sqrt(2 / (1 + 5)), bound = sqrt(3) * gain / sqrt(fan_in) = 1.0
    bound = math.sqrt(3.0) * math.sqrt(2.0 / (1.0 + 5.0))
    weight = jax.random.uniform(kw, (E, 1), jnp.float32, -bound, bound)

    # Mask with some zero positions (exercises the masked_fill path).
    mask = (jax.random.uniform(km, (B, T)) > 0.2).astype(jnp.int32)

    # Masked path, auto-picked tile (>= 2 grid blocks -> padding + megacore split).
    out_m, a_m = attention_forward(x, weight, mask)
    # Unmasked path, explicit small tile -> 3-block grid, no mask DMA stream at all.
    out_u, a_u = attention_forward(x, weight, None, b_tile=8)
    # bf16 input path: x streamed from HBM as bf16 (half the bytes), f32 math in-kernel.
    x_bf16 = x.astype(jnp.bfloat16)
    out_b, a_b = attention_forward(x_bf16, weight, mask)
    jax.block_until_ready((out_m, a_m, out_u, a_u, out_b, a_b))

    ref_out_m, ref_a_m = _reference(x, weight, mask)
    ref_out_u, ref_a_u = _reference(x, weight, None)
    ref_out_b, ref_a_b = _reference(x_bf16, weight, mask)

    assert out_m.shape == (B, E) and a_m.shape == (B, T)
    assert out_u.shape == (B, E) and a_u.shape == (B, T)
    assert out_b.dtype == jnp.bfloat16 and a_b.dtype == jnp.bfloat16

    # Exact softmax divide -> tight f32 tolerances.
    assert jnp.allclose(out_m, ref_out_m, atol=1e-5, rtol=1e-5)
    assert jnp.allclose(a_m, ref_a_m, atol=1e-5, rtol=1e-5)
    assert jnp.allclose(out_u, ref_out_u, atol=1e-5, rtol=1e-5)
    assert jnp.allclose(a_u, ref_a_u, atol=1e-5, rtol=1e-5)
    # bf16 outputs: tolerance covers only the final bf16 rounding of the f32 result.
    assert jnp.allclose(out_b.astype(jnp.float32), ref_out_b, atol=2e-2, rtol=2e-2)
    assert jnp.allclose(a_b.astype(jnp.float32), ref_a_b, atol=2e-2, rtol=2e-2)

    print("KERNEL_OK")
</pallas_src>

<mosaic_0001>
module attributes {stable_mosaic.version = 11 : i64} {
  func.func @_attn_kernel_masked(%arg0: i32, %arg1: memref<16x8x32xf32, #tpu.memory_space<vmem>>, %arg2: memref<1x32xf32, #tpu.memory_space<vmem>>, %arg3: memref<16x8xi32, #tpu.memory_space<vmem>>, %arg4: memref<16x40xf32, #tpu.memory_space<vmem>>) attributes {dimension_semantics = [#tpu.dimension_semantics<parallel>], iteration_bounds = array<i64: 2>, scalar_prefetch = 0 : i64, scratch_operands = 0 : i64, tpu.core_type = #tpu.core_type<tc>, window_params = [{transform_indices = @transform_0, window_bounds = array<i64: 16, 8, 32>}, {pipeline_mode = #tpu.pipeline_mode<synchronous>, transform_indices = @transform_1, window_bounds = array<i64: 1, 32>}, {transform_indices = @transform_2, window_bounds = array<i64: 16, 8>}, {transform_indices = @transform_3, window_bounds = array<i64: 16, 40>}]} {
    %c0 = arith.constant 0 : index
    %c0_0 = arith.constant 0 : index
    %c0_1 = arith.constant 0 : index
    %0 = vector.load %arg1[%c0, %c0_0, %c0_1] : memref<16x8x32xf32, #tpu.memory_space<vmem>>, vector<16x8x32xf32>
    %c0_2 = arith.constant 0 : index
    %c0_3 = arith.constant 0 : index
    %1 = vector.load %arg2[%c0_2, %c0_3] : memref<1x32xf32, #tpu.memory_space<vmem>>, vector<1x32xf32>
    %c0_4 = arith.constant 0 : index
    %c0_5 = arith.constant 0 : index
    %2 = vector.load %arg3[%c0_4, %c0_5] : memref<16x8xi32, #tpu.memory_space<vmem>>, vector<16x8xi32>
    %3 = vector.shape_cast %1 : vector<1x32xf32> to vector<1x1x32xf32>
    %4 = vector.broadcast %3 : vector<1x1x32xf32> to vector<16x8x32xf32>
    %5 = arith.mulf %0, %4 : vector<16x8x32xf32>
    %cst = arith.constant dense<0.000000e+00> : vector<16x8xf32>
    %6 = vector.multi_reduction <add>, %5, %cst [2] : vector<16x8x32xf32> to vector<16x8xf32>
    %7 = math.tanh %6 : vector<16x8xf32>
    %c0_i32 = arith.constant 0 : i32
    %8 = vector.broadcast %c0_i32 : i32 to vector<16x8xi32>
    %9 = arith.cmpi eq, %2, %8 : vector<16x8xi32>
    %cst_6 = arith.constant -1.000000e+09 : f32
    %10 = vector.broadcast %cst_6 : f32 to vector<16x8xf32>
    %11 = arith.select %9, %10, %7 : vector<16x8xi1>, vector<16x8xf32>
    %cst_7 = arith.constant dense<0xFF800000> : vector<16xf32>
    %12 = vector.multi_reduction <maximumf>, %11, %cst_7 [1] : vector<16x8xf32> to vector<16xf32>
    %13 = vector.shape_cast %12 : vector<16xf32> to vector<16x1xf32>
    %14 = vector.broadcast %13 : vector<16x1xf32> to vector<16x8xf32>
    %15 = arith.subf %11, %14 : vector<16x8xf32>
    %16 = math.exp %15 : vector<16x8xf32>
    %cst_8 = arith.constant dense<0.000000e+00> : vector<16xf32>
    %17 = vector.multi_reduction <add>, %16, %cst_8 [1] : vector<16x8xf32> to vector<16xf32>
    %18 = vector.shape_cast %17 : vector<16xf32> to vector<16x1xf32>
    %19 = vector.broadcast %18 : vector<16x1xf32> to vector<16x8xf32>
    %20 = arith.divf %16, %19 : vector<16x8xf32>
    %21 = vector.shape_cast %20 : vector<16x8xf32> to vector<16x8x1xf32>
    %22 = vector.broadcast %21 : vector<16x8x1xf32> to vector<16x8x32xf32>
    %23 = arith.mulf %0, %22 : vector<16x8x32xf32>
    %cst_9 = arith.constant dense<0.000000e+00> : vector<16x32xf32>
    %24 = vector.multi_reduction <add>, %23, %cst_9 [1] : vector<16x8x32xf32> to vector<16x32xf32>
    %25 = tpu.concatenate %24, %20 in 1 : vector<16x32xf32>, vector<16x8xf32> -> vector<16x40xf32>
    %c0_10 = arith.constant 0 : index
    %c0_11 = arith.constant 0 : index
    %26 = vector.load %arg4[%c0_10, %c0_11] : memref<16x40xf32, #tpu.memory_space<vmem>>, vector<16x40xf32>
    tpu.vector_store %arg4[%c0_10, %c0_11], %25 {strides = array<i32>} : memref<16x40xf32, #tpu.memory_space<vmem>>, vector<16x40xf32>,
    return
  }
  func.func @transform_0(%arg0: i32) -> (i32, i32, i32) {
    %c0_i32 = arith.constant 0 : i32
    %c0_i32_0 = arith.constant 0 : i32
    %c0_i32_1 = arith.constant 0 : i32
    return %arg0, %c0_i32, %c0_i32_0 : i32, i32, i32
  }
  func.func @transform_1(%arg0: i32) -> (i32, i32) {
    %c0_i32 = arith.constant 0 : i32
    %c0_i32_0 = arith.constant 0 : i32
    %c0_i32_1 = arith.constant 0 : i32
    return %c0_i32, %c0_i32_0 : i32, i32
  }
  func.func @transform_2(%arg0: i32) -> (i32, i32) {
    %c0_i32 = arith.constant 0 : i32
    %c0_i32_0 = arith.constant 0 : i32
    return %arg0, %c0_i32 : i32, i32
  }
  func.func @transform_3(%arg0: i32) -> (i32, i32) {
    %c0_i32 = arith.constant 0 : i32
    %c0_i32_0 = arith.constant 0 : i32
    return %arg0, %c0_i32 : i32, i32
  }
}

</mosaic_0001>

<llo_original>
// kernel: tpu_custom_call.1
$region0: #{tpu_custom_call.1}
  #allocation0 [shape = 'u32[]', space=smem, size = 0x4, offset = 0x4, fixed_abs, tag = 'smem constant byte address 0x4 - core index']
  #allocation1 [shape = 'u32[144,128]{1,0:T(1,128)}', space=vmem, size = 0x12000, scoped, tag = 'internal scratch']
  %s0 = inlined_call_operand.hbm [shape: f32[32,8,32], index: 0, kind: input, shape index: {}]
  %s1 = inlined_call_operand.hbm [shape: f32[1,32], index: 1, kind: input, shape index: {}]
  %s2 = inlined_call_operand.hbm [shape: s32[32,8], index: 2, kind: input, shape index: {}]
  %s3 = inlined_call_operand.hbm [shape: f32[32,40], index: 3, kind: output, shape index: {}]
  %s4 = sld [smem:[#allocation0]]
  $region57: #{tpu_custom_call.1} parent=0
    _
  %s6 = ssub.s32 1, %s4
  %s7 = scalar_select 0, %s6, %s4
  $region1: #{tpu_custom_call.1} parent=0
    #allocation2 [shape = 'u8[131072]{0}', space=vmem, size = 0x20000, scoped, tag = 'input window, operand 0']
    #allocation3 [shape = 's32[2]{0}', space=sflag, size = 0x8, scoped, tag = 'scoped memory for tpu_custom_call.1']
    #allocation4 [shape = 's32[2]{0}', space=sflag, size = 0x8, scoped, tag = 'scoped memory for tpu_custom_call.1']
    #allocation5 [shape = 'u8[512]{0}', space=vmem, size = 0x400, scoped, tag = 'input window, operand 1, single buffered']
    #allocation6 [shape = 's32[1]{0}', space=sflag, size = 0x4, scoped, tag = 'scoped memory for tpu_custom_call.1']
    #allocation7 [shape = 'u8[16384]{0}', space=vmem, size = 0x4000, scoped, tag = 'input window, operand 2']
    #allocation8 [shape = 'u8[16384]{0}', space=vmem, size = 0x4000, scoped, tag = 'output window, operand 0']
    %8 = vsyncpa [#allocation3], 0
    %s9 = scalar_lea.sflag [#allocation3], 1
    %10 = vsyncpa %s9, 0
    %11 = vsyncpa [#allocation6], 0
    %12 = vsyncpa [#allocation4], 0
    %s13 = scalar_lea.sflag [#allocation4], 1
    %14 = vsyncpa %s13, 0
    loop: start=0, step=1, limit=4
    $region2: #{tpu_custom_call.1} parent=1 // loop_pre_header
      _
    $region3: #{tpu_custom_call.1} parent=1 // loop_header
      %s16 = sphi 0, %s20
      %p17 = scmp.ge.s32.totalorder %s16, 4
      %s26 = sphi 0, %s28
      %s29 = sphi 0, %s26
      %s30 = sphi 0, %s29
      %s46 = sphi 0, %s30
      %s50 = sphi 0, %s50
      %s52 = sphi 0, %s50
      %s53 = sphi 0, %s52
      %s67 = sphi 0, %s53
      %s73 = sphi 0, %s75
      %s76 = sphi 0, %s73
      %s77 = sphi 0, %s76
      %s93 = sphi 0, %s77
      %s99 = sphi 0, %s101
      %s102 = sphi 0, %s99
      %s103 = sphi 0, %s102
      %s119 = sphi 0, %s103
    $region4: #{tpu_custom_call.1} parent=1 // loop_header_branch
      %19 = sbr.rel (%p17) target = $region8
    $region5: #{tpu_custom_call.1} parent=1 // loop_body
      %s21 = ssub.s32 %s16, 1
      %s22 = ssub.s32 %s16, 2
      %s23 = sadd.s32 %s16, 1
      %s24 = ssub.s32 %s16, %s23
      %p25 = scmp.eq.s32.totalorder %s24, 0
      %s27 = sadd.s32 %s26, 1
      %s28 = scalar_select %p25, %s26, %s27
      %p31 = pneg %p25
      %p32 = scmp.eq.s32.totalorder %s16, 1
      %p33 = por %p31, %p32
      %p34 = scmp.ne.s32.totalorder %s26, %s29
      %p35 = scmp.eq.s32.totalorder %s16, 0
      %p36 = por %p34, %p35
      %p37 = scmp.ne.s32.totalorder %s26, %s29
      %p38 = scmp.eq.s32.totalorder %s21, 1
      %p39 = por %p37, %p38
      %p40 = scmp.ne.s32.totalorder %s29, %s30
      %p41 = scmp.eq.s32.totalorder %s21, 0
      %p42 = por %p40, %p41
      %p43 = scmp.ne.s32.totalorder %s29, %s30
      %p44 = scmp.eq.s32.totalorder %s22, 1
      %p45 = por %p43, %p44
      %p47 = scmp.ne.s32.totalorder %s30, %s46
      %p48 = scmp.eq.s32.totalorder %s22, 0
      %p49 = por %p47, %p48
      %s51 = sadd.s32 %s50, 1
      %p54 = scmp.eq.s32.totalorder %s16, 1
      %p55 = scmp.ne.s32.totalorder %s50, %s52
      %p56 = scmp.eq.s32.totalorder %s16, 0
      %p57 = por %p55, %p56
      %p58 = scmp.ne.s32.totalorder %s50, %s52
      %p59 = scmp.eq.s32.totalorder %s21, 1
      %p60 = por %p58, %p59
      %p61 = scmp.ne.s32.totalorder %s52, %s53
      %p62 = scmp.eq.s32.totalorder %s21, 0
      %p63 = por %p61, %p62
      %p64 = scmp.ne.s32.totalorder %s52, %s53
      %p65 = scmp.eq.s32.totalorder %s22, 1
      %p66 = por %p64, %p65
      %p68 = scmp.ne.s32.totalorder %s53, %s67
      %p69 = scmp.eq.s32.totalorder %s22, 0
      %p70 = por %p68, %p69
      %s71 = ssub.s32 %s16, %s23
      %p72 = scmp.eq.s32.totalorder %s71, 0
      %s74 = sadd.s32 %s73, 1
      %s75 = scalar_select %p72, %s73, %s74
      %p78 = pneg %p72
      %p79 = scmp.eq.s32.totalorder %s16, 1
      %p80 = por %p78, %p79
      %p81 = scmp.ne.s32.totalorder %s73, %s76
      %p82 = scmp.eq.s32.totalorder %s16, 0
      %p83 = por %p81, %p82
      %p84 = scmp.ne.s32.totalorder %s73, %s76
      %p85 = scmp.eq.s32.totalorder %s21, 1
      %p86 = por %p84, %p85
      %p87 = scmp.ne.s32.totalorder %s76, %s77
      %p88 = scmp.eq.s32.totalorder %s21, 0
      %p89 = por %p87, %p88
      %p90 = scmp.ne.s32.totalorder %s76, %s77
      %p91 = scmp.eq.s32.totalorder %s22, 1
      %p92 = por %p90, %p91
      %p94 = scmp.ne.s32.totalorder %s77, %s93
      %p95 = scmp.eq.s32.totalorder %s22, 0
      %p96 = por %p94, %p95
      %s97 = ssub.s32 %s16, %s23
      %p98 = scmp.eq.s32.totalorder %s97, 0
      %s100 = sadd.s32 %s99, 1
      %s101 = scalar_select %p98, %s99, %s100
      %p104 = pneg %p98
      %p105 = scmp.eq.s32.totalorder %s16, 1
      %p106 = por %p104, %p105
      %p107 = scmp.ne.s32.totalorder %s99, %s102
      %p108 = scmp.eq.s32.totalorder %s16, 0
      %p109 = por %p107, %p108
      %p110 = scmp.ne.s32.totalorder %s99, %s102
      %p111 = scmp.eq.s32.totalorder %s21, 1
      %p112 = por %p110, %p111
      %p113 = scmp.ne.s32.totalorder %s102, %s103
      %p114 = scmp.eq.s32.totalorder %s21, 0
      %p115 = por %p113, %p114
      %p116 = scmp.ne.s32.totalorder %s102, %s103
      %p117 = scmp.eq.s32.totalorder %s22, 1
      %p118 = por %p116, %p117
      %p120 = scmp.ne.s32.totalorder %s103, %s119
      %p121 = scmp.eq.s32.totalorder %s22, 0
      %p122 = por %p120, %p121
      %p123 = scmp.le.s32.totalorder 1, %s16
      %p124 = scmp.lt.s32.totalorder %s16, 3
      %p125 = pnand %p123, %p124
      %p126 = pneg %p125
      // Predicated region
      $region9: #{tpu_custom_call.1} parent=5 // pred_check
        _
      $region10: #{tpu_custom_call.1} parent=5 // pred_check_branch
        %128 = sbr.rel (%p125) target = $region12
      $region11: #{tpu_custom_call.1} parent=5 // pred_region
        %s129 = ssub.s32 %s16, 1
        // Predicated region
        $region13: #{tpu_custom_call.1} parent=11 // pred_check
          %p130 = pneg %p63
        $region14: #{tpu_custom_call.1} parent=11 // pred_check_branch
          %132 = sbr.rel (%p130) target = $region16
        $region15: #{tpu_custom_call.1} parent=11 // pred_region
          %s134 = ssub.s32 16, 16
          %135 = vsyncadd [#allocation6], %s134
          %s137 = sshll.u32 [#allocation5], 4
          %s138 = int_to_ptr.vmem [resolvable:$true] %s137
          %140 = dma.hbm_to_vmem [thread:$0]  %s1, 16, %s138, [#allocation6]
        $region16: #{tpu_custom_call.1} parent=11 // pred_fallthru
          _
      $region12: #{tpu_custom_call.1} parent=5 // pred_fallthru
        _
      %p141 = scmp.lt.s32.totalorder %s16, 2
      // Predicated region
      $region17: #{tpu_custom_call.1} parent=5 // pred_check
        %p142 = pneg %p141
      $region18: #{tpu_custom_call.1} parent=5 // pred_check_branch
        %144 = sbr.rel (%p142) target = $region20
      $region19: #{tpu_custom_call.1} parent=5 // pred_region
        // Predicated region
        $region21: #{tpu_custom_call.1} parent=19 // pred_check
          %p145 = pneg %p36
        $region22: #{tpu_custom_call.1} parent=19 // pred_check_branch
          %147 = sbr.rel (%p145) target = $region24
        $region23: #{tpu_custom_call.1} parent=19 // pred_region
          %s148 = sand.u32 %s16, 1
          %s149 = scalar_lea.sflag [#allocation3], %s148
          %s150 = sand.u32 %s26, 1
          %s151 = smul.addr %s150, 128
          %s152 = scalar_lea.vmem [#allocation2], %s151
          %s153 = smul.u32 16, %s16
          %s155 = ssub.s32 2048, 2048
          %156 = vsyncadd %s149, %s155
          %s157 = smul.addr %s153, 128
          %s158 = scalar_lea.hbm %s0, %s157
          %s159 = sshll.u32 %s152, 4
          %s160 = int_to_ptr.vmem [resolvable:$true] %s159
          %165 = dma.hbm_to_vmem [thread:$0]  %s158, 2048, %s160, %s149, 128, 128, 8
        $region24: #{tpu_custom_call.1} parent=19 // pred_fallthru
          _
        // Predicated region
        $region25: #{tpu_custom_call.1} parent=19 // pred_check
          %p166 = pneg %p83
        $region26: #{tpu_custom_call.1} parent=19 // pred_check_branch
          %168 = sbr.rel (%p166) target = $region28
        $region27: #{tpu_custom_call.1} parent=19 // pred_region
          %s169 = sand.u32 %s16, 1
          %s170 = scalar_lea.sflag [#allocation3], %s169
          %s171 = sand.u32 %s73, 1
          %s172 = smul.addr %s171, 16
          %s173 = scalar_lea.vmem [#allocation7], %s172
          %s174 = smul.u32 2, %s16
          %s176 = ssub.s32 256, 256
          %177 = vsyncadd %s170, %s176
          %s178 = smul.addr %s174, 128
          %s179 = scalar_lea.hbm %s2, %s178
          %s180 = sshll.u32 %s173, 4
          %s181 = int_to_ptr.vmem [resolvable:$true] %s180
          %186 = dma.hbm_to_vmem [thread:$0]  %s179, 256, %s181, %s170, 128, 128, 8
        $region28: #{tpu_custom_call.1} parent=19 // pred_fallthru
          _
      $region20: #{tpu_custom_call.1} parent=5 // pred_fallthru
        _
      %p187 = scmp.le.s32.totalorder 1, %s16
      %p188 = scmp.lt.s32.totalorder %s16, 3
      %p189 = pnand %p187, %p188
      %p190 = pneg %p189
      // Predicated region
      $region29: #{tpu_custom_call.1} parent=5 // pred_check
        _
      $region30: #{tpu_custom_call.1} parent=5 // pred_check_branch
        %192 = sbr.rel (%p189) target = $region32
      $region31: #{tpu_custom_call.1} parent=5 // pred_region
        %s193 = ssub.s32 %s16, 1
        %s194 = sand.u32 %s21, 1
        %s195 = scalar_lea.sflag [#allocation3], %s194
        %s196 = sand.u32 %s29, 1
        %s197 = smul.addr %s196, 128
        %s198 = scalar_lea.vmem [#allocation2], %s197
        // Predicated region
        $region33: #{tpu_custom_call.1} parent=31 // pred_check
          %p199 = pneg %p42
        $region34: #{tpu_custom_call.1} parent=31 // pred_check_branch
          %201 = sbr.rel (%p199) target = $region36
        $region35: #{tpu_custom_call.1} parent=31 // pred_region
          %202 = dma.done %s195, 2048
        $region36: #{tpu_custom_call.1} parent=31 // pred_fallthru
          _
        // Predicated region
        $region37: #{tpu_custom_call.1} parent=31 // pred_check
          %p203 = pneg %p63
        $region38: #{tpu_custom_call.1} parent=31 // pred_check_branch
          %205 = sbr.rel (%p203) target = $region40
        $region39: #{tpu_custom_call.1} parent=31 // pred_region
          %206 = dma.done [#allocation6], 16
        $region40: #{tpu_custom_call.1} parent=31 // pred_fallthru
          _
        %s207 = sand.u32 %s21, 1
        %s208 = scalar_lea.sflag [#allocation3], %s207
        %s209 = sand.u32 %s76, 1
        %s210 = smul.addr %s209, 16
        %s211 = scalar_lea.vmem [#allocation7], %s210
        // Predicated region
        $region41: #{tpu_custom_call.1} parent=31 // pred_check
          %p212 = pneg %p89
        $region42: #{tpu_custom_call.1} parent=31 // pred_check_branch
          %214 = sbr.rel (%p212) target = $region44
        $region43: #{tpu_custom_call.1} parent=31 // pred_region
          %215 = dma.done %s208, 256
        $region44: #{tpu_custom_call.1} parent=31 // pred_fallthru
          _
        %s216 = sand.u32 %s21, 1
        %s217 = scalar_lea.sflag [#allocation3], %s216
        %s218 = sand.u32 %s29, 1
        %s219 = smul.addr %s218, 128
        %s220 = scalar_lea.vmem [#allocation2], %s219
        %p221 = pneg %p42
        %p222 = pneg %p39
        %p223 = pneg %p63
        %p224 = pneg %p60
        %s225 = sand.u32 %s21, 1
        %s226 = scalar_lea.sflag [#allocation3], %s225
        %s227 = sand.u32 %s76, 1
        %s228 = smul.addr %s227, 16
        %s229 = scalar_lea.vmem [#allocation7], %s228
        %p230 = pneg %p89
        %p231 = pneg %p86
        %p232 = pneg %p115
        %p233 = pneg %p112
        %s234 = sand.u32 %s102, 1
        %s235 = scalar_lea.sflag [#allocation4], %s234
        %s236 = sand.u32 %s102, 1
        %s237 = smul.addr %s236, 16
        %s238 = scalar_lea.vmem [#allocation8], %s237
        %s239 = smul.u32 16, %s21
        %s240 = smul.u32 2, %s21
        %s241 = smul.u32 2, %s21
        %v242 = vld [vmem:[%s198] sm:$0xff]
        %v243 = vld [vmem:[%s198 + $0x8] sm:$0xff]
        %v244 = vld [vmem:[%s198 + $0x10] sm:$0xff]
        %v245 = vld [vmem:[%s198 + $0x18] sm:$0xff]
        %v246 = vld [vmem:[%s198 + $0x20] sm:$0xff]
        %v247 = vld [vmem:[%s198 + $0x28] sm:$0xff]
        %v248 = vld [vmem:[%s198 + $0x30] sm:$0xff]
        %v249 = vld [vmem:[%s198 + $0x38] sm:$0xff]
        %v250 = vld [vmem:[%s198 + $0x40] sm:$0xff]
        %v251 = vld [vmem:[%s198 + $0x48] sm:$0xff]
        %v252 = vld [vmem:[%s198 + $0x50] sm:$0xff]
        %v253 = vld [vmem:[%s198 + $0x58] sm:$0xff]
        %v254 = vld [vmem:[%s198 + $0x60] sm:$0xff]
        %v255 = vld [vmem:[%s198 + $0x68] sm:$0xff]
        %v256 = vld [vmem:[%s198 + $0x70] sm:$0xff]
        %v257 = vld [vmem:[%s198 + $0x78] sm:$0xff]
        %v258 = vld [vmem:[#allocation5] sm:$0x1]
        %v259 = vld [vmem:[%s211] sm:$0xff]
        %v260 = vld [vmem:[%s211 + $0x8] sm:$0xff]
        %v262 = vlaneseq
        %v263 = vshrl.u32 %v262, 7
        %v264 = vsub.s32 0, %v263
        %v265 = vrot.slane %v258, %v264
        %v267 = vmul.f32 %v242, %v265
        %v268 = vmul.f32 %v243, %v265
        %v269 = vmul.f32 %v244, %v265
        %v270 = vmul.f32 %v245, %v265
        %v271 = vmul.f32 %v246, %v265
        %v272 = vmul.f32 %v247, %v265
        %v273 = vmul.f32 %v248, %v265
        %v274 = vmul.f32 %v249, %v265
        %v275 = vmul.f32 %v250, %v265
        %v276 = vmul.f32 %v251, %v265
        %v277 = vmul.f32 %v252, %v265
        %v278 = vmul.f32 %v253, %v265
        %v279 = vmul.f32 %v254, %v265
        %v280 = vmul.f32 %v255, %v265
        %v281 = vmul.f32 %v256, %v265
        %v282 = vmul.f32 %v257, %v265
        %vm283 = vcmask 261120
        %v284 = vsel %vm283, %v267, 0.0
        %285 = vadd.xlane.f32.xlu0 %v284
        %v286 = vpop.xlane.xlu0 %285
        %v287 = vsel %vm283, %v268, 0.0
        %288 = vadd.xlane.f32.xlu0 %v287
        %v289 = vpop.xlane.xlu0 %288
        %v290 = vsel %vm283, %v269, 0.0
        %291 = vadd.xlane.f32.xlu0 %v290
        %v292 = vpop.xlane.xlu0 %291
        %v293 = vsel %vm283, %v270, 0.0
        %294 = vadd.xlane.f32.xlu0 %v293
        %v295 = vpop.xlane.xlu0 %294
        %v296 = vsel %vm283, %v271, 0.0
        %297 = vadd.xlane.f32.xlu0 %v296
        %v298 = vpop.xlane.xlu0 %297
        %v299 = vsel %vm283, %v272, 0.0
        %300 = vadd.xlane.f32.xlu0 %v299
        %v301 = vpop.xlane.xlu0 %300
        %v302 = vsel %vm283, %v273, 0.0
        %303 = vadd.xlane.f32.xlu0 %v302
        %v304 = vpop.xlane.xlu0 %303
        %v305 = vsel %vm283, %v274, 0.0
        %306 = vadd.xlane.f32.xlu0 %v305
        %v307 = vpop.xlane.xlu0 %306
        %v308 = vsel %vm283, %v275, 0.0
        %309 = vadd.xlane.f32.xlu0 %v308
        %v310 = vpop.xlane.xlu0 %309
        %v311 = vsel %vm283, %v276, 0.0
        %312 = vadd.xlane.f32.xlu0 %v311
        %v313 = vpop.xlane.xlu0 %312
        %v314 = vsel %vm283, %v277, 0.0
        %315 = vadd.xlane.f32.xlu0 %v314
        %v316 = vpop.xlane.xlu0 %315
        %v317 = vsel %vm283, %v278, 0.0
        %318 = vadd.xlane.f32.xlu0 %v317
        %v319 = vpop.xlane.xlu0 %318
        %v320 = vsel %vm283, %v279, 0.0
        %321 = vadd.xlane.f32.xlu0 %v320
        %v322 = vpop.xlane.xlu0 %321
        %v323 = vsel %vm283, %v280, 0.0
        %324 = vadd.xlane.f32.xlu0 %v323
        %v325 = vpop.xlane.xlu0 %324
        %v326 = vsel %vm283, %v281, 0.0
        %327 = vadd.xlane.f32.xlu0 %v326
        %v328 = vpop.xlane.xlu0 %327
        %v329 = vsel %vm283, %v282, 0.0
        %330 = vadd.xlane.f32.xlu0 %v329
        %v331 = vpop.xlane.xlu0 %330
        %v332 = vtanh.pop %v286
        %v333 = vtanh.pop %v289
        %v334 = vtanh.pop %v292
        %v335 = vtanh.pop %v295
        %v336 = vtanh.pop %v298
        %v337 = vtanh.pop %v301
        %v338 = vtanh.pop %v304
        %v339 = vtanh.pop %v307
        %v340 = vtanh.pop %v310
        %v341 = vtanh.pop %v313
        %v342 = vtanh.pop %v316
        %v343 = vtanh.pop %v319
        %v344 = vtanh.pop %v322
        %v345 = vtanh.pop %v325
        %v346 = vtanh.pop %v328
        %v347 = vtanh.pop %v331
        %vm348 = vcmp.eq.s32.totalorder %v259, 0
        %vm349 = vcmp.eq.s32.totalorder %v260, 0
        %v366 = vlaneseq
        %v367 = vand.u32 %v366, 127
        %v368 = vlaneseq
        %v369 = vshrl.u32 %v368, 7
        %v370 = vsub.s32 %v367, %v369
        %v371 = vrot.slane %v332, %v370
        %v372 = vlaneseq
        %v373 = vshrl.u32 %v372, 7
        %v374 = vsub.s32 %v367, %v373
        %v375 = vrot.slane %v333, %v374
        %v376 = vlaneseq
        %v377 = vshrl.u32 %v376, 7
        %v378 = vsub.s32 %v367, %v377
        %v379 = vrot.slane %v334, %v378
        %v380 = vlaneseq
        %v381 = vshrl.u32 %v380, 7
        %v382 = vsub.s32 %v367, %v381
        %v383 = vrot.slane %v335, %v382
        %v384 = vlaneseq
        %v385 = vshrl.u32 %v384, 7
        %v386 = vsub.s32 %v367, %v385
        %v387 = vrot.slane %v336, %v386
        %v388 = vlaneseq
        %v389 = vshrl.u32 %v388, 7
        %v390 = vsub.s32 %v367, %v389
        %v391 = vrot.slane %v337, %v390
        %v392 = vlaneseq
        %v393 = vshrl.u32 %v392, 7
        %v394 = vsub.s32 %v367, %v393
        %v395 = vrot.slane %v338, %v394
        %v396 = vlaneseq
        %v397 = vshrl.u32 %v396, 7
        %v398 = vsub.s32 %v367, %v397
        %v399 = vrot.slane %v339, %v398
        %v400 = vlaneseq
        %v401 = vshrl.u32 %v400, 7
        %v402 = vsub.s32 %v367, %v401
        %v403 = vrot.slane %v340, %v402
        %v404 = vlaneseq
        %v405 = vshrl.u32 %v404, 7
        %v406 = vsub.s32 %v367, %v405
        %v407 = vrot.slane %v341, %v406
        %v408 = vlaneseq
        %v409 = vshrl.u32 %v408, 7
        %v410 = vsub.s32 %v367, %v409
        %v411 = vrot.slane %v342, %v410
        %v412 = vlaneseq
        %v413 = vshrl.u32 %v412, 7
        %v414 = vsub.s32 %v367, %v413
        %v415 = vrot.slane %v343, %v414
        %v416 = vlaneseq
        %v417 = vshrl.u32 %v416, 7
        %v418 = vsub.s32 %v367, %v417
        %v419 = vrot.slane %v344, %v418
        %v420 = vlaneseq
        %v421 = vshrl.u32 %v420, 7
        %v422 = vsub.s32 %v367, %v421
        %v423 = vrot.slane %v345, %v422
        %v424 = vlaneseq
        %v425 = vshrl.u32 %v424, 7
        %v426 = vsub.s32 %v367, %v425
        %v427 = vrot.slane %v346, %v426
        %v428 = vlaneseq
        %v429 = vshrl.u32 %v428, 7
        %v430 = vsub.s32 %v367, %v429
        %v431 = vrot.slane %v347, %v430
        %vm432 = vcmask 1041409
        %v433 = vsel %vm432, %v375, %v371
        %vm434 = vcmask 1042434
        %v435 = vsel %vm434, %v379, %v433
        %vm436 = vcmask 1043459
        %v437 = vsel %vm436, %v383, %v435
        %vm438 = vcmask 1044484
        %v439 = vsel %vm438, %v387, %v437
        %vm440 = vcmask 1045509
        %v441 = vsel %vm440, %v391, %v439
        %vm442 = vcmask 1046534
        %v443 = vsel %vm442, %v395, %v441
        %vm444 = vcmask 1047559
        %v445 = vsel %vm444, %v399, %v443
        %v446 = vsel %vm432, %v407, %v403
        %v447 = vsel %vm434, %v411, %v446
        %v448 = vsel %vm436, %v415, %v447
        %v449 = vsel %vm438, %v419, %v448
        %v450 = vsel %vm440, %v423, %v449
        %v451 = vsel %vm442, %v427, %v450
        %v452 = vsel %vm444, %v431, %v451
        %v455 = vsel %vm348, -1e+09, %v445
        %v456 = vsel %vm349, -1e+09, %v452
        %vm457 = vcmask 64512
        %v458 = vsel %vm457, %v455, -inf
        %459 = vmax.xlane.f32.xlu0 %v458
        %v460 = vpop.xlane.xlu0 %459
        %v461 = vsel %vm457, %v456, -inf
        %462 = vmax.xlane.f32.xlu0 %v461
        %v463 = vpop.xlane.xlu0 %462
        %v464 = vsub.f32 %v455, %v460
        %v465 = vsub.f32 %v456, %v463
        %v466 = vmul.f32 %v464, 1.442695
        %v467 = vpow.pop %v466
        %v468 = vmul.f32 %v465, 1.442695
        %v469 = vpow.pop %v468
        %v470 = vsel %vm457, %v467, 0.0
        %471 = vadd.xlane.f32.xlu0 %v470
        %v472 = vpop.xlane.xlu0 %471
        %v473 = vsel %vm457, %v469, 0.0
        %474 = vadd.xlane.f32.xlu0 %v473
        %v475 = vpop.xlane.xlu0 %474
        %v476 = vrcp.pop %v472
        %v477 = vmul.f32 %v467, %v476
        %v478 = vrcp.pop %v475
        %v479 = vmul.f32 %v469, %v478
        %v480 = vlaneseq
        %v481 = vshrl.u32 %v480, 7
        %v482 = vsub.s32 0, %v481
        %v483 = vrot.slane %v477, %v482
        %485 = vbcast.lane.b32.xlu0 %v483, 256
        %v486 = vpop.permute.xlu0 %485
        %v487 = vlaneseq
        %v488 = vshrl.u32 %v487, 7
        %v489 = vsub.s32 1, %v488
        %v490 = vrot.slane %v477, %v489
        %492 = vbcast.lane.b32.xlu0 %v490, 256
        %v493 = vpop.permute.xlu0 %492
        %v494 = vlaneseq
        %v495 = vshrl.u32 %v494, 7
        %v496 = vsub.s32 2, %v495
        %v497 = vrot.slane %v477, %v496
        %499 = vbcast.lane.b32.xlu0 %v497, 256
        %v500 = vpop.permute.xlu0 %499
        %v501 = vlaneseq
        %v502 = vshrl.u32 %v501, 7
        %v503 = vsub.s32 3, %v502
        %v504 = vrot.slane %v477, %v503
        %506 = vbcast.lane.b32.xlu0 %v504, 256
        %v507 = vpop.permute.xlu0 %506
        %v508 = vlaneseq
        %v509 = vshrl.u32 %v508, 7
        %v510 = vsub.s32 4, %v509
        %v511 = vrot.slane %v477, %v510
        %513 = vbcast.lane.b32.xlu0 %v511, 256
        %v514 = vpop.permute.xlu0 %513
        %v515 = vlaneseq
        %v516 = vshrl.u32 %v515, 7
        %v517 = vsub.s32 5, %v516
        %v518 = vrot.slane %v477, %v517
        %520 = vbcast.lane.b32.xlu0 %v518, 256
        %v521 = vpop.permute.xlu0 %520
        %v522 = vlaneseq
        %v523 = vshrl.u32 %v522, 7
        %v524 = vsub.s32 6, %v523
        %v525 = vrot.slane %v477, %v524
        %527 = vbcast.lane.b32.xlu0 %v525, 256
        %v528 = vpop.permute.xlu0 %527
        %v529 = vlaneseq
        %v530 = vshrl.u32 %v529, 7
        %v531 = vsub.s32 7, %v530
        %v532 = vrot.slane %v477, %v531
        %534 = vbcast.lane.b32.xlu0 %v532, 256
        %v535 = vpop.permute.xlu0 %534
        %v536 = vlaneseq
        %v537 = vshrl.u32 %v536, 7
        %v538 = vsub.s32 0, %v537
        %v539 = vrot.slane %v479, %v538
        %541 = vbcast.lane.b32.xlu0 %v539, 256
        %v542 = vpop.permute.xlu0 %541
        %v543 = vlaneseq
        %v544 = vshrl.u32 %v543, 7
        %v545 = vsub.s32 1, %v544
        %v546 = vrot.slane %v479, %v545
        %548 = vbcast.lane.b32.xlu0 %v546, 256
        %v549 = vpop.permute.xlu0 %548
        %v550 = vlaneseq
        %v551 = vshrl.u32 %v550, 7
        %v552 = vsub.s32 2, %v551
        %v553 = vrot.slane %v479, %v552
        %555 = vbcast.lane.b32.xlu0 %v553, 256
        %v556 = vpop.permute.xlu0 %555
        %v557 = vlaneseq
        %v558 = vshrl.u32 %v557, 7
        %v559 = vsub.s32 3, %v558
        %v560 = vrot.slane %v479, %v559
        %562 = vbcast.lane.b32.xlu0 %v560, 256
        %v563 = vpop.permute.xlu0 %562
        %v564 = vlaneseq
        %v565 = vshrl.u32 %v564, 7
        %v566 = vsub.s32 4, %v565
        %v567 = vrot.slane %v479, %v566
        %569 = vbcast.lane.b32.xlu0 %v567, 256
        %v570 = vpop.permute.xlu0 %569
        %v571 = vlaneseq
        %v572 = vshrl.u32 %v571, 7
        %v573 = vsub.s32 5, %v572
        %v574 = vrot.slane %v479, %v573
        %576 = vbcast.lane.b32.xlu0 %v574, 256
        %v577 = vpop.permute.xlu0 %576
        %v578 = vlaneseq
        %v579 = vshrl.u32 %v578, 7
        %v580 = vsub.s32 6, %v579
        %v581 = vrot.slane %v479, %v580
        %583 = vbcast.lane.b32.xlu0 %v581, 256
        %v584 = vpop.permute.xlu0 %583
        %v585 = vlaneseq
        %v586 = vshrl.u32 %v585, 7
        %v587 = vsub.s32 7, %v586
        %v588 = vrot.slane %v479, %v587
        %590 = vbcast.lane.b32.xlu0 %v588, 256
        %v591 = vpop.permute.xlu0 %590
        %v592 = vmul.f32 %v242, %v486
        %v593 = vmul.f32 %v243, %v493
        %v594 = vmul.f32 %v244, %v500
        %v595 = vmul.f32 %v245, %v507
        %v596 = vmul.f32 %v246, %v514
        %v597 = vmul.f32 %v247, %v521
        %v598 = vmul.f32 %v248, %v528
        %v599 = vmul.f32 %v249, %v535
        %v600 = vmul.f32 %v250, %v542
        %v601 = vmul.f32 %v251, %v549
        %v602 = vmul.f32 %v252, %v556
        %v603 = vmul.f32 %v253, %v563
        %v604 = vmul.f32 %v254, %v570
        %v605 = vmul.f32 %v255, %v577
        %v606 = vmul.f32 %v256, %v584
        %v607 = vmul.f32 %v257, %v591
        %v608 = vsel %vm283, %v592, 0.0
        %v609 = vrot.slane %v608, 4
        %v610 = vadd.f32 %v608, %v609
        %v611 = vrot.slane %v610, 2
        %v612 = vadd.f32 %v610, %v611
        %v613 = vrot.slane %v612, 1
        %v614 = vadd.f32 %v612, %v613
        %v615 = vsel %vm283, %v593, 0.0
        %v616 = vrot.slane %v615, 4
        %v617 = vadd.f32 %v615, %v616
        %v618 = vrot.slane %v617, 2
        %v619 = vadd.f32 %v617, %v618
        %v620 = vrot.slane %v619, 1
        %v621 = vadd.f32 %v619, %v620
        %v622 = vsel %vm283, %v594, 0.0
        %v623 = vrot.slane %v622, 4
        %v624 = vadd.f32 %v622, %v623
        %v625 = vrot.slane %v624, 2
        %v626 = vadd.f32 %v624, %v625
        %v627 = vrot.slane %v626, 1
        %v628 = vadd.f32 %v626, %v627
        %v629 = vsel %vm283, %v595, 0.0
        %v630 = vrot.slane %v629, 4
        %v631 = vadd.f32 %v629, %v630
        %v632 = vrot.slane %v631, 2
        %v633 = vadd.f32 %v631, %v632
        %v634 = vrot.slane %v633, 1
        %v635 = vadd.f32 %v633, %v634
        %v636 = vsel %vm283, %v596, 0.0
        %v637 = vrot.slane %v636, 4
        %v638 = vadd.f32 %v636, %v637
        %v639 = vrot.slane %v638, 2
        %v640 = vadd.f32 %v638, %v639
        %v641 = vrot.slane %v640, 1
        %v642 = vadd.f32 %v640, %v641
        %v643 = vsel %vm283, %v597, 0.0
        %v644 = vrot.slane %v643, 4
        %v645 = vadd.f32 %v643, %v644
        %v646 = vrot.slane %v645, 2
        %v647 = vadd.f32 %v645, %v646
        %v648 = vrot.slane %v647, 1
        %v649 = vadd.f32 %v647, %v648
        %v650 = vsel %vm283, %v598, 0.0
        %v651 = vrot.slane %v650, 4
        %v652 = vadd.f32 %v650, %v651
        %v653 = vrot.slane %v652, 2
        %v654 = vadd.f32 %v652, %v653
        %v655 = vrot.slane %v654, 1
        %v656 = vadd.f32 %v654, %v655
        %v657 = vsel %vm283, %v599, 0.0
        %v658 = vrot.slane %v657, 4
        %v659 = vadd.f32 %v657, %v658
        %v660 = vrot.slane %v659, 2
        %v661 = vadd.f32 %v659, %v660
        %v662 = vrot.slane %v661, 1
        %v663 = vadd.f32 %v661, %v662
        %v664 = vsel %vm283, %v600, 0.0
        %v665 = vrot.slane %v664, 4
        %v666 = vadd.f32 %v664, %v665
        %v667 = vrot.slane %v666, 2
        %v668 = vadd.f32 %v666, %v667
        %v669 = vrot.slane %v668, 1
        %v670 = vadd.f32 %v668, %v669
        %v671 = vsel %vm283, %v601, 0.0
        %v672 = vrot.slane %v671, 4
        %v673 = vadd.f32 %v671, %v672
        %v674 = vrot.slane %v673, 2
        %v675 = vadd.f32 %v673, %v674
        %v676 = vrot.slane %v675, 1
        %v677 = vadd.f32 %v675, %v676
        %v678 = vsel %vm283, %v602, 0.0
        %v679 = vrot.slane %v678, 4
        %v680 = vadd.f32 %v678, %v679
        %v681 = vrot.slane %v680, 2
        %v682 = vadd.f32 %v680, %v681
        %v683 = vrot.slane %v682, 1
        %v684 = vadd.f32 %v682, %v683
        %v685 = vsel %vm283, %v603, 0.0
        %v686 = vrot.slane %v685, 4
        %v687 = vadd.f32 %v685, %v686
        %v688 = vrot.slane %v687, 2
        %v689 = vadd.f32 %v687, %v688
        %v690 = vrot.slane %v689, 1
        %v691 = vadd.f32 %v689, %v690
        %v692 = vsel %vm283, %v604, 0.0
        %v693 = vrot.slane %v692, 4
        %v694 = vadd.f32 %v692, %v693
        %v695 = vrot.slane %v694, 2
        %v696 = vadd.f32 %v694, %v695
        %v697 = vrot.slane %v696, 1
        %v698 = vadd.f32 %v696, %v697
        %v699 = vsel %vm283, %v605, 0.0
        %v700 = vrot.slane %v699, 4
        %v701 = vadd.f32 %v699, %v700
        %v702 = vrot.slane %v701, 2
        %v703 = vadd.f32 %v701, %v702
        %v704 = vrot.slane %v703, 1
        %v705 = vadd.f32 %v703, %v704
        %v706 = vsel %vm283, %v606, 0.0
        %v707 = vrot.slane %v706, 4
        %v708 = vadd.f32 %v706, %v707
        %v709 = vrot.slane %v708, 2
        %v710 = vadd.f32 %v708, %v709
        %v711 = vrot.slane %v710, 1
        %v712 = vadd.f32 %v710, %v711
        %v713 = vsel %vm283, %v607, 0.0
        %v714 = vrot.slane %v713, 4
        %v715 = vadd.f32 %v713, %v714
        %v716 = vrot.slane %v715, 2
        %v717 = vadd.f32 %v715, %v716
        %v718 = vrot.slane %v717, 1
        %v719 = vadd.f32 %v717, %v718
        %v736 = vsel %vm432, %v621, %v614
        %v737 = vsel %vm434, %v628, %v736
        %v738 = vsel %vm436, %v635, %v737
        %v739 = vsel %vm438, %v642, %v738
        %v740 = vsel %vm440, %v649, %v739
        %v741 = vsel %vm442, %v656, %v740
        %v742 = vsel %vm444, %v663, %v741
        %v743 = vsel %vm432, %v677, %v670
        %v744 = vsel %vm434, %v684, %v743
        %v745 = vsel %vm436, %v691, %v744
        %v746 = vsel %vm438, %v698, %v745
        %v747 = vsel %vm440, %v705, %v746
        %v748 = vsel %vm442, %v712, %v747
        %v749 = vsel %vm444, %v719, %v748
        %754 = vrot.lane.b32.xlu0 %v477, 32
        %v755 = vpop.permute.xlu0 %754
        %756 = vrot.lane.b32.xlu0 %v479, 32
        %v757 = vpop.permute.xlu0 %756
        %v760 = vsel %vm283, %v742, %v755
        %v761 = vsel %vm283, %v749, %v757
        %vm762 = vcmask 326656
        %763 = vst.msk [vmem:[%s238] sm:$0xff] %vm762, %v760
        %764 = vst.msk [vmem:[%s238 + $0x8] sm:$0xff] %vm762, %v761
        %s765 = sand.u32 %s102, 1
        %s766 = scalar_lea.sflag [#allocation4], %s765
        %s767 = sand.u32 %s102, 1
        %s768 = smul.addr %s767, 16
        %s769 = scalar_lea.vmem [#allocation8], %s768
        // Predicated region
        $region45: #{tpu_custom_call.1} parent=31 // pred_check
          %p770 = pneg %p112
        $region46: #{tpu_custom_call.1} parent=31 // pred_check_branch
          %772 = sbr.rel (%p770) target = $region48
        $region47: #{tpu_custom_call.1} parent=31 // pred_region
          %s773 = smul.u32 2, %s21
          %s775 = ssub.s32 256, 256
          %776 = vsyncadd %s766, %s775
          %s777 = smul.addr %s773, 128
          %s778 = scalar_lea.hbm %s3, %s777
          %s779 = sshll.u32 %s769, 4
          %s780 = int_to_ptr.vmem [resolvable:$true] %s779
          %785 = dma.vmem_to_hbm [thread:$0]  %s780, 256, %s778, %s766, 128, 128, 8
        $region48: #{tpu_custom_call.1} parent=31 // pred_fallthru
          _
      $region32: #{tpu_custom_call.1} parent=5 // pred_fallthru
        _
      %p786 = scmp.le.s32.totalorder 2, %s16
      // Predicated region
      $region49: #{tpu_custom_call.1} parent=5 // pred_check
        %p787 = pneg %p786
      $region50: #{tpu_custom_call.1} parent=5 // pred_check_branch
        %789 = sbr.rel (%p787) target = $region52
      $region51: #{tpu_custom_call.1} parent=5 // pred_region
        %s790 = ssub.s32 %s16, 2
        // Predicated region
        $region53: #{tpu_custom_call.1} parent=51 // pred_check
          %p791 = pneg %p118
        $region54: #{tpu_custom_call.1} parent=51 // pred_check_branch
          %793 = sbr.rel (%p791) target = $region56
        $region55: #{tpu_custom_call.1} parent=51 // pred_region
          %s794 = sand.u32 %s103, 1
          %s795 = scalar_lea.sflag [#allocation4], %s794
          %s796 = sand.u32 %s103, 1
          %s797 = smul.addr %s796, 16
          %s798 = scalar_lea.vmem [#allocation8], %s797
          %799 = dma.done %s795, 256
        $region56: #{tpu_custom_call.1} parent=51 // pred_fallthru
          _
      $region52: #{tpu_custom_call.1} parent=5 // pred_fallthru
        _
    $region6: #{tpu_custom_call.1} parent=1 // loop_footer
      %s20 = sadd.s32 1, %s16
    $region7: #{tpu_custom_call.1} parent=1 // loop_footer_branch
      %15 = sbr.rel target = $region3
    $region8: #{tpu_custom_call.1} parent=1 // loop_exit
      _
    %800 = vsyncpa [#allocation3], 1
    %s801 = scalar_lea.sflag [#allocation3], 1
    %802 = vsyncpa %s801, 1
    %803 = vsyncpa [#allocation6], 1
    %804 = vsyncpa [#allocation4], 1
    %s805 = scalar_lea.sflag [#allocation4], 1
    %806 = vsyncpa %s805, 1

</llo_original>
